<compile_context>
chip_gen: v7x
topology: tpu7x:2x2x1
jax: 0.10.0
libtpu: 0.0.40
codegen_flags: <defaults>
</compile_context>

<pallas_src>
import functools

import jax
import jax.numpy as jnp
from jax.experimental import pallas as pl
from jax.experimental.pallas import tpu as pltpu


def _activation(y, act_type):
    if act_type == 'relu':
        return jnp.maximum(y, 0.0)
    elif act_type == 'lrelu':
        return jnp.where(y >= 0, y, 0.1 * y)     # nn.LeakyReLU(0.1) per module
    elif act_type == 'mish':
        return y * jnp.tanh(jax.nn.softplus(y))
    elif act_type == 'silu':
        # y * sigmoid(y); the reciprocal goes to the (otherwise idle) EUP slot.
        return y * pl.reciprocal(1.0 + jnp.exp(-y), approx=True)
    return y


def _conv3d_kernel(x_ref, w_ref, b_ref, o_ref, *, act_type, use_bias):
    # One (C2, C1*k^3) @ (C1*k^3, TM) matmul, f32 accumulation on the MXU.
    y = jnp.dot(w_ref[...], x_ref[...], preferred_element_type=jnp.float32)
    if use_bias:
        y = y + b_ref[...]                       # (C2, TM) + (C2, 1)
    y = _activation(y, act_type)
    o_ref[...] = y.astype(o_ref.dtype)


def _round_up(x, m):
    return ((x + m - 1) // m) * m


def _pick_lane_tile(L, c1t, c2, vmem_budget=16 * 1024 * 1024):
    """Lane tile: multiple of 128, <= 2048, fits the VMEM budget, minimal pad."""
    def tile_bytes(tm):
        # double-buffered bf16 input block + double-buffered f32 output block
        return 2 * (c1t * tm * 2) + 2 * (c2 * tm * 4)
    candidates = [t for t in (2048, 1024, 512, 256, 128)
                  if tile_bytes(t) <= vmem_budget]
    if not candidates:
        candidates = [128]
    # minimize padded total length; prefer the larger tile on ties
    return min(candidates, key=lambda t: (_round_up(L, t), -t))


@functools.partial(
    jax.jit,
    static_argnames=('k', 'p', 's', 'd', 'g', 'act_type', 'norm_type',
                     'depthwise'))
def conv3d_pallas(x, weight, bias, *, k, p, s, d, g=1, act_type='',
                  norm_type='', depthwise=False):
    assert g == 1 and not depthwise, "only groups=1, non-depthwise path"
    assert norm_type == '', "norm layers not implemented"
    # TODO(synk): depthwise / grouped conv and BatchNorm3d/InstanceNorm3d paths
    # are not implemented (module defaults: norm_type='', g=1, depthwise=False).

    N, C1, D, H, W = x.shape
    C2 = weight.shape[0]
    Dout = (D + 2 * p - d * (k - 1) - 1) // s + 1
    Hout = (H + 2 * p - d * (k - 1) - 1) // s + 1
    Wout = (W + 2 * p - d * (k - 1) - 1) // s + 1
    M = Dout * Hout * Wout
    T = k * k * k
    C1T = C1 * T

    # ---- JAX glue: pad, per-tap strided slices, fold taps into contraction --
    # x_cols[(c1, kd, kh, kw), n*M + flat(do,ho,wo)]
    #     = x_pad[n, c1, do*s + kd*d, ho*s + kh*d, wo*s + kw*d]
    xb = x.astype(jnp.bfloat16)          # bf16 streamed operands, f32 accum
    x_p = jnp.pad(xb, ((0, 0), (0, 0), (p, p), (p, p), (p, p)))
    taps = []
    for kd in range(k):
        for kh in range(k):
            for kw in range(k):
                sl = jax.lax.slice(
                    x_p,
                    (0, 0, kd * d, kh * d, kw * d),
                    (N, C1,
                     kd * d + (Dout - 1) * s + 1,
                     kh * d + (Hout - 1) * s + 1,
                     kw * d + (Wout - 1) * s + 1),
                    (1, 1, s, s, s))
                taps.append(sl.reshape(N, C1, M))
    x_cols = jnp.stack(taps, axis=2).reshape(N, C1T, M)            # (N, C1*T, M)
    # TODO(synk): for large inputs, form the k^3 taps in-kernel from a
    # VMEM-resident padded tile instead of materializing im2col in HBM.
    x_cols = jnp.transpose(x_cols, (1, 0, 2)).reshape(C1T, N * M)  # batch->lanes

    L = N * M
    TM = _pick_lane_tile(L, C1T, C2)
    L_pad = _round_up(L, TM)
    if L_pad != L:
        x_cols = jnp.pad(x_cols, ((0, 0), (0, L_pad - L)))

    w2 = weight.reshape(C2, C1T).astype(jnp.bfloat16)              # (C2, C1*T)
    use_bias = bias is not None
    b2 = (bias if use_bias else jnp.zeros((C2,), jnp.float32))
    b2 = b2.astype(jnp.float32).reshape(C2, 1)

    kernel = functools.partial(_conv3d_kernel, act_type=act_type,
                               use_bias=use_bias)

    out = pl.pallas_call(
        kernel,
        out_shape=jax.ShapeDtypeStruct((C2, L_pad), x.dtype),
        grid_spec=pltpu.PrefetchScalarGridSpec(
            num_scalar_prefetch=0,
            grid=(L_pad // TM,),                           # single wide parallel axis
            in_specs=[
                pl.BlockSpec((C1T, TM), lambda m: (0, m)),   # streamed im2col cols
                pl.BlockSpec((C2, C1T), lambda m: (0, 0)),   # weights: VMEM-resident
                pl.BlockSpec((C2, 1), lambda m: (0, 0)),     # bias:    VMEM-resident
            ],
            out_specs=pl.BlockSpec((C2, TM), lambda m: (0, m)),
        ),
        compiler_params=pltpu.CompilerParams(
            dimension_semantics=("parallel",),
            vmem_limit_bytes=32 * 1024 * 1024),
    )(x_cols, w2, b2)

    out = out[:, :L].reshape(C2, N, M)
    out = jnp.transpose(out, (1, 0, 2)).reshape(N, C2, Dout, Hout, Wout)
    return out


if __name__ == "__main__":
    key = jax.random.PRNGKey(0)
    k1, k2, k3 = jax.random.split(key, 3)

    # Conv3d(c1=4, c2=8, k=3, p=1, s=1, d=1, g=1, act_type='silu',
    #        norm_type='', depthwise=False)  ->  conv3d (bias=True) + SiLU
    N, C1, C2 = 2, 4, 8
    D, H, W = 8, 12, 16
    k, p, s, dil = 3, 1, 1, 1

    x = jax.random.normal(k1, (N, C1, D, H, W), jnp.float32)
    weight = jax.random.normal(k2, (C2, C1, k, k, k), jnp.float32) * 0.1
    bias = jax.random.normal(k3, (C2,), jnp.float32) * 0.1

    out = conv3d_pallas(x, weight, bias, k=k, p=p, s=s, d=dil, g=1,
                        act_type='silu', norm_type='', depthwise=False)
    out = jax.block_until_ready(out)

    # Reference: XLA conv with the same bf16-cast operands + f32 accumulation,
    # then bias + exact SiLU (kernel uses an approx-reciprocal sigmoid).
    ref = jax.lax.conv_general_dilated(
        x.astype(jnp.bfloat16), weight.astype(jnp.bfloat16),
        window_strides=(s, s, s), padding=[(p, p)] * 3,
        rhs_dilation=(dil, dil, dil),
        dimension_numbers=('NCDHW', 'OIDHW', 'NCDHW'),
        preferred_element_type=jnp.float32)
    ref = ref + bias.reshape(1, C2, 1, 1, 1)
    ref = ref * jax.nn.sigmoid(ref)

    assert out.shape == ref.shape, (out.shape, ref.shape)
    max_err = float(jnp.max(jnp.abs(out - ref)))
    assert jnp.allclose(out, ref, atol=2e-2, rtol=2e-2), max_err

    print("KERNEL_OK")
</pallas_src>

<mosaic_0001>
module attributes {stable_mosaic.version = 11 : i64} {
  func.func @_conv3d_kernel(%arg0: i32, %arg1: memref<108x1024xbf16, #tpu.memory_space<vmem>>, %arg2: memref<8x108xbf16, #tpu.memory_space<vmem>>, %arg3: memref<8x1xf32, #tpu.memory_space<vmem>>, %arg4: memref<8x1024xf32, #tpu.memory_space<vmem>>) attributes {dimension_semantics = [#tpu.dimension_semantics<parallel>], iteration_bounds = array<i64: 3>, scalar_prefetch = 0 : i64, scratch_operands = 0 : i64, tpu.core_type = #tpu.core_type<tc>, window_params = [{transform_indices = @transform_0, window_bounds = array<i64: 108, 1024>}, {pipeline_mode = #tpu.pipeline_mode<synchronous>, transform_indices = @transform_1, window_bounds = array<i64: 8, 108>}, {pipeline_mode = #tpu.pipeline_mode<synchronous>, transform_indices = @transform_2, window_bounds = array<i64: 8, 1>}, {transform_indices = @transform_3, window_bounds = array<i64: 8, 1024>}]} {
    %c0 = arith.constant 0 : index
    %c0_0 = arith.constant 0 : index
    %0 = vector.load %arg2[%c0, %c0_0] : memref<8x108xbf16, #tpu.memory_space<vmem>>, vector<8x108xbf16>
    %c0_1 = arith.constant 0 : index
    %c0_2 = arith.constant 0 : index
    %1 = vector.load %arg1[%c0_1, %c0_2] : memref<108x1024xbf16, #tpu.memory_space<vmem>>, vector<108x1024xbf16>
    %cst = arith.constant dense<0.000000e+00> : vector<8x1024xf32>
    %2 = tpu.matmul %0, %1, %cst {dimension_numbers = #tpu.dot_dimension_numbers<[1], [0], [0], [1], [0, 0, 1, 1], [], []>} : vector<8x108xbf16>, vector<108x1024xbf16>, vector<8x1024xf32> -> vector<8x1024xf32>
    %c0_3 = arith.constant 0 : index
    %c0_4 = arith.constant 0 : index
    %3 = vector.load %arg3[%c0_3, %c0_4] : memref<8x1xf32, #tpu.memory_space<vmem>>, vector<8x1xf32>
    %4 = vector.broadcast %3 : vector<8x1xf32> to vector<8x1024xf32>
    %5 = arith.addf %2, %4 : vector<8x1024xf32>
    %cst_5 = arith.constant 0.000000e+00 : f32
    %6 = vector.broadcast %cst_5 : f32 to vector<8x1024xf32>
    %7 = arith.subf %6, %5 : vector<8x1024xf32>
    %8 = math.exp %7 : vector<8x1024xf32>
    %cst_6 = arith.constant 1.000000e+00 : f32
    %9 = vector.broadcast %cst_6 : f32 to vector<8x1024xf32>
    %10 = arith.addf %9, %8 : vector<8x1024xf32>
    %11 = tpu.reciprocal %10 {approx = true} : vector<8x1024xf32> -> vector<8x1024xf32>
    %12 = arith.mulf %5, %11 : vector<8x1024xf32>
    %c0_7 = arith.constant 0 : index
    %c0_8 = arith.constant 0 : index
    %13 = vector.load %arg4[%c0_7, %c0_8] : memref<8x1024xf32, #tpu.memory_space<vmem>>, vector<8x1024xf32>
    tpu.vector_store %arg4[%c0_7, %c0_8], %12 {strides = array<i32>} : memref<8x1024xf32, #tpu.memory_space<vmem>>, vector<8x1024xf32>,
    return
  }
  func.func @transform_0(%arg0: i32) -> (i32, i32) {
    %c0_i32 = arith.constant 0 : i32
    %c0_i32_0 = arith.constant 0 : i32
    return %c0_i32, %arg0 : i32, i32
  }
  func.func @transform_1(%arg0: i32) -> (i32, i32) {
    %c0_i32 = arith.constant 0 : i32
    %c0_i32_0 = arith.constant 0 : i32
    %c0_i32_1 = arith.constant 0 : i32
    return %c0_i32, %c0_i32_0 : i32, i32
  }
  func.func @transform_2(%arg0: i32) -> (i32, i32) {
    %c0_i32 = arith.constant 0 : i32
    %c0_i32_0 = arith.constant 0 : i32
    %c0_i32_1 = arith.constant 0 : i32
    return %c0_i32, %c0_i32_0 : i32, i32
  }
  func.func @transform_3(%arg0: i32) -> (i32, i32) {
    %c0_i32 = arith.constant 0 : i32
    %c0_i32_0 = arith.constant 0 : i32
    return %c0_i32, %arg0 : i32, i32
  }
}

</mosaic_0001>

<llo_original>
// kernel: conv3d_pallas.1
$region0: #{conv3d_pallas.1}
  #allocation0 [shape = 'u32[]', space=smem, size = 0x4, offset = 0x4, fixed_abs, tag = 'smem constant byte address 0x4 - core index']
  #allocation1 [shape = 'u32[144,128]{1,0:T(1,128)}', space=vmem, size = 0x12000, scoped, tag = 'internal scratch']
  %s0 = inlined_call_operand.vmem [shape: bf16[108,3072], index: 0, kind: input, shape index: {}]
  %s1 = inlined_call_operand.vmem [shape: bf16[8,108], index: 1, kind: input, shape index: {}]
  %s2 = inlined_call_operand.vmem [shape: f32[8,1], index: 2, kind: input, shape index: {}]
  %s3 = inlined_call_operand.vmem [shape: f32[8,3072], index: 3, kind: output, shape index: {}]
  %s4 = sld [smem:[#allocation0]]
  $region68: #{conv3d_pallas.1} parent=0
    _
  %s6 = ssub.s32 1, %s4
  %s7 = scalar_select 0, %s6, %s4
  $region1: #{conv3d_pallas.1} parent=0
    #allocation2 [shape = 'u8[458752]{0}', space=vmem, size = 0x70000, scoped, tag = 'input window, operand 0']
    loop: start=0, step=1, limit=5
    $region2: #{conv3d_pallas.1} parent=1 // loop_pre_header
      _
    $region3: #{conv3d_pallas.1} parent=1 // loop_header
      %s9 = sphi 0, %s13
      %p10 = scmp.ge.s32.totalorder %s9, 5
      %s19 = sphi 0, %s21
      %s22 = sphi 0, %s19
      %s23 = sphi 0, %s22
      %s39 = sphi 0, %s23
      %s43 = sphi 0, %s43
      %s45 = sphi 0, %s43
      %s46 = sphi 0, %s45
      %s60 = sphi 0, %s46
      %s64 = sphi 0, %s64
      %s66 = sphi 0, %s64
      %s67 = sphi 0, %s66
      %s81 = sphi 0, %s67
      %s87 = sphi 0, %s89
      %s90 = sphi 0, %s87
      %s91 = sphi 0, %s90
      %s107 = sphi 0, %s91
    $region4: #{conv3d_pallas.1} parent=1 // loop_header_branch
      %12 = sbr.rel (%p10) target = $region8
    $region5: #{conv3d_pallas.1} parent=1 // loop_body
      %s14 = ssub.s32 %s9, 1
      %s15 = ssub.s32 %s9, 2
      %s16 = sadd.s32 %s9, 1
      %s17 = ssub.s32 %s9, %s16
      %p18 = scmp.eq.s32.totalorder %s17, 0
      %s20 = sadd.s32 %s19, 1
      %s21 = scalar_select %p18, %s19, %s20
      %p24 = pneg %p18
      %p25 = scmp.eq.s32.totalorder %s9, 2
      %p26 = por %p24, %p25
      %p27 = scmp.ne.s32.totalorder %s19, %s22
      %p28 = scmp.eq.s32.totalorder %s9, 0
      %p29 = por %p27, %p28
      %p30 = scmp.ne.s32.totalorder %s19, %s22
      %p31 = scmp.eq.s32.totalorder %s14, 2
      %p32 = por %p30, %p31
      %p33 = scmp.ne.s32.totalorder %s22, %s23
      %p34 = scmp.eq.s32.totalorder %s14, 0
      %p35 = por %p33, %p34
      %p36 = scmp.ne.s32.totalorder %s22, %s23
      %p37 = scmp.eq.s32.totalorder %s15, 2
      %p38 = por %p36, %p37
      %p40 = scmp.ne.s32.totalorder %s23, %s39
      %p41 = scmp.eq.s32.totalorder %s15, 0
      %p42 = por %p40, %p41
      %s44 = sadd.s32 %s43, 1
      %p47 = scmp.eq.s32.totalorder %s9, 2
      %p48 = scmp.ne.s32.totalorder %s43, %s45
      %p49 = scmp.eq.s32.totalorder %s9, 0
      %p50 = por %p48, %p49
      %p51 = scmp.ne.s32.totalorder %s43, %s45
      %p52 = scmp.eq.s32.totalorder %s14, 2
      %p53 = por %p51, %p52
      %p54 = scmp.ne.s32.totalorder %s45, %s46
      %p55 = scmp.eq.s32.totalorder %s14, 0
      %p56 = por %p54, %p55
      %p57 = scmp.ne.s32.totalorder %s45, %s46
      %p58 = scmp.eq.s32.totalorder %s15, 2
      %p59 = por %p57, %p58
      %p61 = scmp.ne.s32.totalorder %s46, %s60
      %p62 = scmp.eq.s32.totalorder %s15, 0
      %p63 = por %p61, %p62
      %s65 = sadd.s32 %s64, 1
      %p68 = scmp.eq.s32.totalorder %s9, 2
      %p69 = scmp.ne.s32.totalorder %s64, %s66
      %p70 = scmp.eq.s32.totalorder %s9, 0
      %p71 = por %p69, %p70
      %p72 = scmp.ne.s32.totalorder %s64, %s66
      %p73 = scmp.eq.s32.totalorder %s14, 2
      %p74 = por %p72, %p73
      %p75 = scmp.ne.s32.totalorder %s66, %s67
      %p76 = scmp.eq.s32.totalorder %s14, 0
      %p77 = por %p75, %p76
      %p78 = scmp.ne.s32.totalorder %s66, %s67
      %p79 = scmp.eq.s32.totalorder %s15, 2
      %p80 = por %p78, %p79
      %p82 = scmp.ne.s32.totalorder %s67, %s81
      %p83 = scmp.eq.s32.totalorder %s15, 0
      %p84 = por %p82, %p83
      %s85 = ssub.s32 %s9, %s16
      %p86 = scmp.eq.s32.totalorder %s85, 0
      %s88 = sadd.s32 %s87, 1
      %s89 = scalar_select %p86, %s87, %s88
      %p92 = pneg %p86
      %p93 = scmp.eq.s32.totalorder %s9, 2
      %p94 = por %p92, %p93
      %p95 = scmp.ne.s32.totalorder %s87, %s90
      %p96 = scmp.eq.s32.totalorder %s9, 0
      %p97 = por %p95, %p96
      %p98 = scmp.ne.s32.totalorder %s87, %s90
      %p99 = scmp.eq.s32.totalorder %s14, 2
      %p100 = por %p98, %p99
      %p101 = scmp.ne.s32.totalorder %s90, %s91
      %p102 = scmp.eq.s32.totalorder %s14, 0
      %p103 = por %p101, %p102
      %p104 = scmp.ne.s32.totalorder %s90, %s91
      %p105 = scmp.eq.s32.totalorder %s15, 2
      %p106 = por %p104, %p105
      %p108 = scmp.ne.s32.totalorder %s91, %s107
      %p109 = scmp.eq.s32.totalorder %s15, 0
      %p110 = por %p108, %p109
      %p111 = scmp.le.s32.totalorder 1, %s9
      %p112 = scmp.lt.s32.totalorder %s9, 4
      %p113 = pnand %p111, %p112
      %p114 = pneg %p113
      // Predicated region
      $region9: #{conv3d_pallas.1} parent=5 // pred_check
        _
      $region10: #{conv3d_pallas.1} parent=5 // pred_check_branch
        %116 = sbr.rel (%p113) target = $region12
      $region11: #{conv3d_pallas.1} parent=5 // pred_region
        %s117 = ssub.s32 %s9, 1
        // Predicated region
        $region13: #{conv3d_pallas.1} parent=11 // pred_check
          %p118 = pneg %p56
        $region14: #{conv3d_pallas.1} parent=11 // pred_check_branch
          %120 = sbr.rel (%p118) target = $region16
        $region15: #{conv3d_pallas.1} parent=11 // pred_region
          _
        $region16: #{conv3d_pallas.1} parent=11 // pred_fallthru
          _
        // Predicated region
        $region17: #{conv3d_pallas.1} parent=11 // pred_check
          %p121 = pneg %p77
        $region18: #{conv3d_pallas.1} parent=11 // pred_check_branch
          %123 = sbr.rel (%p121) target = $region20
        $region19: #{conv3d_pallas.1} parent=11 // pred_region
          _
        $region20: #{conv3d_pallas.1} parent=11 // pred_fallthru
          _
      $region12: #{conv3d_pallas.1} parent=5 // pred_fallthru
        _
      %p124 = scmp.lt.s32.totalorder %s9, 3
      // Predicated region
      $region21: #{conv3d_pallas.1} parent=5 // pred_check
        %p125 = pneg %p124
      $region22: #{conv3d_pallas.1} parent=5 // pred_check_branch
        %127 = sbr.rel (%p125) target = $region24
      $region23: #{conv3d_pallas.1} parent=5 // pred_region
        // Predicated region
        $region25: #{conv3d_pallas.1} parent=23 // pred_check
          %p128 = pneg %p29
        $region26: #{conv3d_pallas.1} parent=23 // pred_check_branch
          %130 = sbr.rel (%p128) target = $region28
        $region27: #{conv3d_pallas.1} parent=23 // pred_region
          %s131 = sand.u32 %s19, 1
          %s132 = sand.u32 %s19, 1
          %s133 = smul.addr %s132, 448
          %s134 = scalar_lea.vmem [#allocation2], %s133
          %s135 = smul.u32 8, %s9
          %s136 = smul.addr %s135, 4
          %s137 = scalar_lea.vmem %s0, %s136
          // Predicated region
          $region29: #{conv3d_pallas.1} parent=27 // pred_check
            _
          $region30: #{conv3d_pallas.1} parent=27 // pred_check_branch
            %139 = sbr.rel (0) target = $region32
          $region31: #{conv3d_pallas.1} parent=27 // pred_region
            // Predicated region
            $region33: #{conv3d_pallas.1} parent=31 // pred_check
              _
            $region34: #{conv3d_pallas.1} parent=31 // pred_check_branch
              %141 = sbr.rel (0) target = $region36
            $region35: #{conv3d_pallas.1} parent=31 // pred_region
              loop: start=0, step=1, limit=1
              $region37: #{conv3d_pallas.1} parent=35 // loop_pre_header
                _
              $region38: #{conv3d_pallas.1} parent=35 // loop_header
                %s143 = sphi 0, %s147
                %p144 = scmp.ge.s32.totalorder %s143, 1
                %s148 = sphi %s137, %s137
                %s149 = sphi %s134, %s134
              $region39: #{conv3d_pallas.1} parent=35 // loop_header_branch
                %146 = sbr.rel (%p144) target = $region43
              $region40: #{conv3d_pallas.1} parent=35 // loop_body
                %v150 = vld [vmem:[%s148] sm:$0xff]
                %151 = vst [vmem:[%s149] sm:$0xff] %v150
                %v152 = vld [vmem:[%s148 + $0x8] sm:$0xff]
                %153 = vst [vmem:[%s149 + $0x8] sm:$0xff] %v152
                %v154 = vld [vmem:[%s148 + $0x10] sm:$0xff]
                %155 = vst [vmem:[%s149 + $0x10] sm:$0xff] %v154
                %v156 = vld [vmem:[%s148 + $0x18] sm:$0xff]
                %157 = vst [vmem:[%s149 + $0x18] sm:$0xff] %v156
                %v158 = vld [vmem:[%s148 + $0x60] sm:$0xff]
                %159 = vst [vmem:[%s149 + $0x20] sm:$0xff] %v158
                %v160 = vld [vmem:[%s148 + $0x68] sm:$0xff]
                %161 = vst [vmem:[%s149 + $0x28] sm:$0xff] %v160
                %v162 = vld [vmem:[%s148 + $0x70] sm:$0xff]
                %163 = vst [vmem:[%s149 + $0x30] sm:$0xff] %v162
                %v164 = vld [vmem:[%s148 + $0x78] sm:$0xff]
                %165 = vst [vmem:[%s149 + $0x38] sm:$0xff] %v164
                %v166 = vld [vmem:[%s148 + $0xc0] sm:$0xff]
                %167 = vst [vmem:[%s149 + $0x40] sm:$0xff] %v166
                %v168 = vld [vmem:[%s148 + $0xc8] sm:$0xff]
                %169 = vst [vmem:[%s149 + $0x48] sm:$0xff] %v168
                %v170 = vld [vmem:[%s148 + $0xd0] sm:$0xff]
                %171 = vst [vmem:[%s149 + $0x50] sm:$0xff] %v170
                %v172 = vld [vmem:[%s148 + $0xd8] sm:$0xff]
                %173 = vst [vmem:[%s149 + $0x58] sm:$0xff] %v172
                %v174 = vld [vmem:[%s148 + $0x120] sm:$0xff]
                %175 = vst [vmem:[%s149 + $0x60] sm:$0xff] %v174
                %v176 = vld [vmem:[%s148 + $0x128] sm:$0xff]
                %177 = vst [vmem:[%s149 + $0x68] sm:$0xff] %v176
                %v178 = vld [vmem:[%s148 + $0x130] sm:$0xff]
                %179 = vst [vmem:[%s149 + $0x70] sm:$0xff] %v178
                %v180 = vld [vmem:[%s148 + $0x138] sm:$0xff]
                %181 = vst [vmem:[%s149 + $0x78] sm:$0xff] %v180
                %v182 = vld [vmem:[%s148 + $0x180] sm:$0xff]
                %183 = vst [vmem:[%s149 + $0x80] sm:$0xff] %v182
                %v184 = vld [vmem:[%s148 + $0x188] sm:$0xff]
                %185 = vst [vmem:[%s149 + $0x88] sm:$0xff] %v184
                %v186 = vld [vmem:[%s148 + $0x190] sm:$0xff]
                %187 = vst [vmem:[%s149 + $0x90] sm:$0xff] %v186
                %v188 = vld [vmem:[%s148 + $0x198] sm:$0xff]
                %189 = vst [vmem:[%s149 + $0x98] sm:$0xff] %v188
                %v190 = vld [vmem:[%s148 + $0x1e0] sm:$0xff]
                %191 = vst [vmem:[%s149 + $0xa0] sm:$0xff] %v190
                %v192 = vld [vmem:[%s148 + $0x1e8] sm:$0xff]
                %193 = vst [vmem:[%s149 + $0xa8] sm:$0xff] %v192
                %v194 = vld [vmem:[%s148 + $0x1f0] sm:$0xff]
                %195 = vst [vmem:[%s149 + $0xb0] sm:$0xff] %v194
                %v196 = vld [vmem:[%s148 + $0x1f8] sm:$0xff]
                %197 = vst [vmem:[%s149 + $0xb8] sm:$0xff] %v196
                %v198 = vld [vmem:[%s148 + $0x240] sm:$0xff]
                %199 = vst [vmem:[%s149 + $0xc0] sm:$0xff] %v198
                %v200 = vld [vmem:[%s148 + $0x248] sm:$0xff]
                %201 = vst [vmem:[%s149 + $0xc8] sm:$0xff] %v200
                %v202 = vld [vmem:[%s148 + $0x250] sm:$0xff]
                %203 = vst [vmem:[%s149 + $0xd0] sm:$0xff] %v202
                %v204 = vld [vmem:[%s148 + $0x258] sm:$0xff]
                %205 = vst [vmem:[%s149 + $0xd8] sm:$0xff] %v204
                %v206 = vld [vmem:[%s148 + $0x2a0] sm:$0xff]
                %207 = vst [vmem:[%s149 + $0xe0] sm:$0xff] %v206
                %v208 = vld [vmem:[%s148 + $0x2a8] sm:$0xff]
                %209 = vst [vmem:[%s149 + $0xe8] sm:$0xff] %v208
                %v210 = vld [vmem:[%s148 + $0x2b0] sm:$0xff]
                %211 = vst [vmem:[%s149 + $0xf0] sm:$0xff] %v210
                %v212 = vld [vmem:[%s148 + $0x2b8] sm:$0xff]
                %213 = vst [vmem:[%s149 + $0xf8] sm:$0xff] %v212
                %v214 = vld [vmem:[%s148 + $0x300] sm:$0xff]
                %215 = vst [vmem:[%s149 + $0x100] sm:$0xff] %v214
                %v216 = vld [vmem:[%s148 + $0x308] sm:$0xff]
                %217 = vst [vmem:[%s149 + $0x108] sm:$0xff] %v216
                %v218 = vld [vmem:[%s148 + $0x310] sm:$0xff]
                %219 = vst [vmem:[%s149 + $0x110] sm:$0xff] %v218
                %v220 = vld [vmem:[%s148 + $0x318] sm:$0xff]
                %221 = vst [vmem:[%s149 + $0x118] sm:$0xff] %v220
                %v222 = vld [vmem:[%s148 + $0x360] sm:$0xff]
                %223 = vst [vmem:[%s149 + $0x120] sm:$0xff] %v222
                %v224 = vld [vmem:[%s148 + $0x368] sm:$0xff]
                %225 = vst [vmem:[%s149 + $0x128] sm:$0xff] %v224
                %v226 = vld [vmem:[%s148 + $0x370] sm:$0xff]
                %227 = vst [vmem:[%s149 + $0x130] sm:$0xff] %v226
                %v228 = vld [vmem:[%s148 + $0x378] sm:$0xff]
                %229 = vst [vmem:[%s149 + $0x138] sm:$0xff] %v228
                %v230 = vld [vmem:[%s148 + $0x3c0] sm:$0xff]
                %231 = vst [vmem:[%s149 + $0x140] sm:$0xff] %v230
                %v232 = vld [vmem:[%s148 + $0x3c8] sm:$0xff]
                %233 = vst [vmem:[%s149 + $0x148] sm:$0xff] %v232
                %v234 = vld [vmem:[%s148 + $0x3d0] sm:$0xff]
                %235 = vst [vmem:[%s149 + $0x150] sm:$0xff] %v234
                %v236 = vld [vmem:[%s148 + $0x3d8] sm:$0xff]
                %237 = vst [vmem:[%s149 + $0x158] sm:$0xff] %v236
                %v238 = vld [vmem:[%s148 + $0x420] sm:$0xff]
                %239 = vst [vmem:[%s149 + $0x160] sm:$0xff] %v238
                %v240 = vld [vmem:[%s148 + $0x428] sm:$0xff]
                %241 = vst [vmem:[%s149 + $0x168] sm:$0xff] %v240
                %v242 = vld [vmem:[%s148 + $0x430] sm:$0xff]
                %243 = vst [vmem:[%s149 + $0x170] sm:$0xff] %v242
                %v244 = vld [vmem:[%s148 + $0x438] sm:$0xff]
                %245 = vst [vmem:[%s149 + $0x178] sm:$0xff] %v244
                %v246 = vld [vmem:[%s148 + $0x480] sm:$0xff]
                %247 = vst [vmem:[%s149 + $0x180] sm:$0xff] %v246
                %v248 = vld [vmem:[%s148 + $0x488] sm:$0xff]
                %249 = vst [vmem:[%s149 + $0x188] sm:$0xff] %v248
                %v250 = vld [vmem:[%s148 + $0x490] sm:$0xff]
                %251 = vst [vmem:[%s149 + $0x190] sm:$0xff] %v250
                %v252 = vld [vmem:[%s148 + $0x498] sm:$0xff]
                %253 = vst [vmem:[%s149 + $0x198] sm:$0xff] %v252
                %v254 = vld [vmem:[%s148 + $0x4e0] sm:$0xff]
                %255 = vst [vmem:[%s149 + $0x1a0] sm:$0xff] %v254
                %v256 = vld [vmem:[%s148 + $0x4e8] sm:$0xff]
                %257 = vst [vmem:[%s149 + $0x1a8] sm:$0xff] %v256
                %v258 = vld [vmem:[%s148 + $0x4f0] sm:$0xff]
                %259 = vst [vmem:[%s149 + $0x1b0] sm:$0xff] %v258
                %v260 = vld [vmem:[%s148 + $0x4f8] sm:$0xff]
                %261 = vst [vmem:[%s149 + $0x1b8] sm:$0xff] %v260
              $region41: #{conv3d_pallas.1} parent=35 // loop_footer
                %s147 = sadd.s32 1, %s143
              $region42: #{conv3d_pallas.1} parent=35 // loop_footer_branch
                %142 = sbr.rel target = $region38
              $region43: #{conv3d_pallas.1} parent=35 // loop_exit
                _
            $region36: #{conv3d_pallas.1} parent=31 // pred_fallthru
              _
            // Predicated region
            $region44: #{conv3d_pallas.1} parent=31 // pred_check
              _
            $region45: #{conv3d_pallas.1} parent=31 // pred_check_branch
              %263 = sbr.rel target = $region47
            $region46: #{conv3d_pallas.1} parent=31 // pred_region
              _
            $region47: #{conv3d_pallas.1} parent=31 // pred_fallthru
              _
          $region32: #{conv3d_pallas.1} parent=27 // pred_fallthru
            _
          %264 = vnop
        $region28: #{conv3d_pallas.1} parent=23 // pred_fallthru
          _
      $region24: #{conv3d_pallas.1} parent=5 // pred_fallthru
        _
      %p265 = scmp.le.s32.totalorder 1, %s9
      %p266 = scmp.lt.s32.totalorder %s9, 4
      %p267 = pnand %p265, %p266
      %p268 = pneg %p267
      // Predicated region
      $region48: #{conv3d_pallas.1} parent=5 // pred_check
        _
      $region49: #{conv3d_pallas.1} parent=5 // pred_check_branch
        %270 = sbr.rel (%p267) target = $region51
      $region50: #{conv3d_pallas.1} parent=5 // pred_region
        %s271 = ssub.s32 %s9, 1
        %s272 = sand.u32 %s22, 1
        %s273 = sand.u32 %s22, 1
        %s274 = smul.addr %s273, 448
        %s275 = scalar_lea.vmem [#allocation2], %s274
        // Predicated region
        $region52: #{conv3d_pallas.1} parent=50 // pred_check
          %p276 = pneg %p35
        $region53: #{conv3d_pallas.1} parent=50 // pred_check_branch
          %278 = sbr.rel (%p276) target = $region55
        $region54: #{conv3d_pallas.1} parent=50 // pred_region
          _
        $region55: #{conv3d_pallas.1} parent=50 // pred_fallthru
          _
        %s279 = sand.u32 %s22, 1
        %s280 = sand.u32 %s22, 1
        %s281 = smul.addr %s280, 448
        %s282 = scalar_lea.vmem [#allocation2], %s281
        %p283 = pneg %p35
        %p284 = pneg %p32
        %p285 = pneg %p56
        %p286 = pneg %p53
        %p287 = pneg %p77
        %p288 = pneg %p74
        %p289 = pneg %p103
        %p290 = pneg %p100
        %s291 = smul.u32 8, %s14
        %p292 = scmp.lt.s32.totalorder %s291, 23
        %s293 = scalar_select %p292, %s291, 23
        %s294 = smul.addr %s293, 8
        %s295 = scalar_lea.vmem %s3, %s294
        %s296 = smul.u32 8, %s14
        %s297 = smul.u32 8, %s14
        %p298 = scmp.lt.s32.totalorder %s297, 23
        %s299 = scalar_select %p298, %s297, 23
        %s300 = smul.addr %s299, 8
        %s301 = scalar_lea.vmem %s3, %s300
        %s302 = smul.u32 8, %s14
        %v304 = vld [vmem:[%s1] sm:$0xf]
        %v305 = vld [vmem:[%s275] sm:$0xff]
        %v306 = vld [vmem:[%s275 + $0x8] sm:$0xff]
        %v307 = vld [vmem:[%s275 + $0x10] sm:$0xff]
        %v308 = vld [vmem:[%s275 + $0x18] sm:$0xff]
        %v309 = vld [vmem:[%s275 + $0x20] sm:$0xff]
        %v310 = vld [vmem:[%s275 + $0x28] sm:$0xff]
        %v311 = vld [vmem:[%s275 + $0x30] sm:$0xff]
        %v312 = vld [vmem:[%s275 + $0x38] sm:$0xff]
        %v313 = vld [vmem:[%s275 + $0x40] sm:$0xff]
        %v314 = vld [vmem:[%s275 + $0x48] sm:$0xff]
        %v315 = vld [vmem:[%s275 + $0x50] sm:$0xff]
        %v316 = vld [vmem:[%s275 + $0x58] sm:$0xff]
        %v317 = vld [vmem:[%s275 + $0x60] sm:$0xff]
        %v318 = vld [vmem:[%s275 + $0x68] sm:$0xff]
        %v319 = vld [vmem:[%s275 + $0x70] sm:$0xff]
        %v320 = vld [vmem:[%s275 + $0x78] sm:$0xff]
        %v321 = vld [vmem:[%s275 + $0x80] sm:$0xff]
        %v322 = vld [vmem:[%s275 + $0x88] sm:$0xff]
        %v323 = vld [vmem:[%s275 + $0x90] sm:$0xff]
        %v324 = vld [vmem:[%s275 + $0x98] sm:$0xff]
        %v325 = vld [vmem:[%s275 + $0xa0] sm:$0xff]
        %v326 = vld [vmem:[%s275 + $0xa8] sm:$0xff]
        %v327 = vld [vmem:[%s275 + $0xb0] sm:$0xff]
        %v328 = vld [vmem:[%s275 + $0xb8] sm:$0xff]
        %v329 = vld [vmem:[%s275 + $0xc0] sm:$0xff]
        %v330 = vld [vmem:[%s275 + $0xc8] sm:$0xff]
        %v331 = vld [vmem:[%s275 + $0xd0] sm:$0xff]
        %v332 = vld [vmem:[%s275 + $0xd8] sm:$0xff]
        %v333 = vld [vmem:[%s275 + $0xe0] sm:$0xff]
        %v334 = vld [vmem:[%s275 + $0xe8] sm:$0xff]
        %v335 = vld [vmem:[%s275 + $0xf0] sm:$0xff]
        %v336 = vld [vmem:[%s275 + $0xf8] sm:$0xff]
        %v337 = vld [vmem:[%s275 + $0x100] sm:$0xff]
        %v338 = vld [vmem:[%s275 + $0x108] sm:$0xff]
        %v339 = vld [vmem:[%s275 + $0x110] sm:$0xff]
        %v340 = vld [vmem:[%s275 + $0x118] sm:$0xff]
        %v341 = vld [vmem:[%s275 + $0x120] sm:$0xff]
        %v342 = vld [vmem:[%s275 + $0x128] sm:$0xff]
        %v343 = vld [vmem:[%s275 + $0x130] sm:$0xff]
        %v344 = vld [vmem:[%s275 + $0x138] sm:$0xff]
        %v345 = vld [vmem:[%s275 + $0x140] sm:$0xff]
        %v346 = vld [vmem:[%s275 + $0x148] sm:$0xff]
        %v347 = vld [vmem:[%s275 + $0x150] sm:$0xff]
        %v348 = vld [vmem:[%s275 + $0x158] sm:$0xff]
        %v349 = vld [vmem:[%s275 + $0x160] sm:$0xff]
        %v350 = vld [vmem:[%s275 + $0x168] sm:$0xff]
        %v351 = vld [vmem:[%s275 + $0x170] sm:$0xff]
        %v352 = vld [vmem:[%s275 + $0x178] sm:$0xff]
        %v353 = vld [vmem:[%s275 + $0x180] sm:$0xff]
        %v354 = vld [vmem:[%s275 + $0x188] sm:$0xff]
        %v355 = vld [vmem:[%s275 + $0x190] sm:$0xff]
        %v356 = vld [vmem:[%s275 + $0x198] sm:$0xff]
        %v357 = vld [vmem:[%s275 + $0x1a0] sm:$0x33]
        %v358 = vld [vmem:[%s275 + $0x1a8] sm:$0x33]
        %v359 = vld [vmem:[%s275 + $0x1b0] sm:$0x33]
        %v360 = vld [vmem:[%s275 + $0x1b8] sm:$0x33]
        %v361 = vld [vmem:[%s2] sm:$0xff]
        %363 = vset.pattern.permute.xlu0 0
        %364 = vperm.xlu0 %363, %v361
        %v365 = vpop.permute.xlu0 %364
        %v423 = vunpack.c.l.b16 %v305
        %v424 = vunpack.c.h.b16 %v305
        %v425 = vunpack.c.l.b16 %v306
        %v426 = vunpack.c.h.b16 %v306
        %v427 = vunpack.c.l.b16 %v307
        %v428 = vunpack.c.h.b16 %v307
        %v429 = vunpack.c.l.b16 %v308
        %v430 = vunpack.c.h.b16 %v308
        %v431 = vunpack.c.l.b16 %v309
        %v432 = vunpack.c.h.b16 %v309
        %v433 = vunpack.c.l.b16 %v310
        %v434 = vunpack.c.h.b16 %v310
        %v435 = vunpack.c.l.b16 %v311
        %v436 = vunpack.c.h.b16 %v311
        %v437 = vunpack.c.l.b16 %v312
        %v438 = vunpack.c.h.b16 %v312
        %v439 = vunpack.c.l.b16 %v313
        %v440 = vunpack.c.h.b16 %v313
        %v441 = vunpack.c.l.b16 %v314
        %v442 = vunpack.c.h.b16 %v314
        %v443 = vunpack.c.l.b16 %v315
        %v444 = vunpack.c.h.b16 %v315
        %v445 = vunpack.c.l.b16 %v316
        %v446 = vunpack.c.h.b16 %v316
        %v447 = vunpack.c.l.b16 %v317
        %v448 = vunpack.c.h.b16 %v317
        %v449 = vunpack.c.l.b16 %v318
        %v450 = vunpack.c.h.b16 %v318
        %v451 = vunpack.c.l.b16 %v319
        %v452 = vunpack.c.h.b16 %v319
        %v453 = vunpack.c.l.b16 %v320
        %v454 = vunpack.c.h.b16 %v320
        %v455 = vunpack.c.l.b16 %v321
        %v456 = vunpack.c.h.b16 %v321
        %v457 = vunpack.c.l.b16 %v322
        %v458 = vunpack.c.h.b16 %v322
        %v459 = vunpack.c.l.b16 %v323
        %v460 = vunpack.c.h.b16 %v323
        %v461 = vunpack.c.l.b16 %v324
        %v462 = vunpack.c.h.b16 %v324
        %v463 = vunpack.c.l.b16 %v325
        %v464 = vunpack.c.h.b16 %v325
        %v465 = vunpack.c.l.b16 %v326
        %v466 = vunpack.c.h.b16 %v326
        %v467 = vunpack.c.l.b16 %v327
        %v468 = vunpack.c.h.b16 %v327
        %v469 = vunpack.c.l.b16 %v328
        %v470 = vunpack.c.h.b16 %v328
        %v471 = vunpack.c.l.b16 %v329
        %v472 = vunpack.c.h.b16 %v329
        %v473 = vunpack.c.l.b16 %v330
        %v474 = vunpack.c.h.b16 %v330
        %v475 = vunpack.c.l.b16 %v331
        %v476 = vunpack.c.h.b16 %v331
        %v477 = vunpack.c.l.b16 %v332
        %v478 = vunpack.c.h.b16 %v332
        %v479 = vunpack.c.l.b16 %v333
        %v480 = vunpack.c.h.b16 %v333
        %v481 = vunpack.c.l.b16 %v334
        %v482 = vunpack.c.h.b16 %v334
        %v483 = vunpack.c.l.b16 %v335
        %v484 = vunpack.c.h.b16 %v335
        %v485 = vunpack.c.l.b16 %v336
        %v486 = vunpack.c.h.b16 %v336
        %v487 = vunpack.c.l.b16 %v337
        %v488 = vunpack.c.h.b16 %v337
        %v489 = vunpack.c.l.b16 %v338
        %v490 = vunpack.c.h.b16 %v338
        %v491 = vunpack.c.l.b16 %v339
        %v492 = vunpack.c.h.b16 %v339
        %v493 = vunpack.c.l.b16 %v340
        %v494 = vunpack.c.h.b16 %v340
        %v495 = vunpack.c.l.b16 %v341
        %v496 = vunpack.c.h.b16 %v341
        %v497 = vunpack.c.l.b16 %v342
        %v498 = vunpack.c.h.b16 %v342
        %v499 = vunpack.c.l.b16 %v343
        %v500 = vunpack.c.h.b16 %v343
        %v501 = vunpack.c.l.b16 %v344
        %v502 = vunpack.c.h.b16 %v344
        %v503 = vunpack.c.l.b16 %v345
        %v504 = vunpack.c.h.b16 %v345
        %v505 = vunpack.c.l.b16 %v346
        %v506 = vunpack.c.h.b16 %v346
        %v507 = vunpack.c.l.b16 %v347
        %v508 = vunpack.c.h.b16 %v347
        %v509 = vunpack.c.l.b16 %v348
        %v510 = vunpack.c.h.b16 %v348
        %v511 = vunpack.c.l.b16 %v349
        %v512 = vunpack.c.h.b16 %v349
        %v513 = vunpack.c.l.b16 %v350
        %v514 = vunpack.c.h.b16 %v350
        %v515 = vunpack.c.l.b16 %v351
        %v516 = vunpack.c.h.b16 %v351
        %v517 = vunpack.c.l.b16 %v352
        %v518 = vunpack.c.h.b16 %v352
        %v519 = vunpack.c.l.b16 %v353
        %v520 = vunpack.c.h.b16 %v353
        %v521 = vunpack.c.l.b16 %v354
        %v522 = vunpack.c.h.b16 %v354
        %v523 = vunpack.c.l.b16 %v355
        %v524 = vunpack.c.h.b16 %v355
        %v525 = vunpack.c.l.b16 %v356
        %v526 = vunpack.c.h.b16 %v356
        %v527 = vunpack.c.l.b16 %v357
        %v528 = vunpack.c.h.b16 %v357
        %v529 = vunpack.c.l.b16 %v358
        %v530 = vunpack.c.h.b16 %v358
        %v531 = vunpack.c.l.b16 %v359
        %v532 = vunpack.c.h.b16 %v359
        %v533 = vunpack.c.l.b16 %v360
        %v534 = vunpack.c.h.b16 %v360
        %v535 = vpack.c.b16 %v431, %v423
        %v536 = vpack.c.b16 %v432, %v424
        %v537 = vpack.c.b16 %v433, %v425
        %v538 = vpack.c.b16 %v434, %v426
        %v539 = vpack.c.b16 %v435, %v427
        %v540 = vpack.c.b16 %v436, %v428
        %v541 = vpack.c.b16 %v437, %v429
        %v542 = vpack.c.b16 %v438, %v430
        %v543 = vpack.c.b16 %v447, %v439
        %v544 = vpack.c.b16 %v448, %v440
        %v545 = vpack.c.b16 %v449, %v441
        %v546 = vpack.c.b16 %v450, %v442
        %v547 = vpack.c.b16 %v451, %v443
        %v548 = vpack.c.b16 %v452, %v444
        %v549 = vpack.c.b16 %v453, %v445
        %v550 = vpack.c.b16 %v454, %v446
        %v551 = vpack.c.b16 %v463, %v455
        %v552 = vpack.c.b16 %v464, %v456
        %v553 = vpack.c.b16 %v465, %v457
        %v554 = vpack.c.b16 %v466, %v458
        %v555 = vpack.c.b16 %v467, %v459
        %v556 = vpack.c.b16 %v468, %v460
        %v557 = vpack.c.b16 %v469, %v461
        %v558 = vpack.c.b16 %v470, %v462
        %v559 = vpack.c.b16 %v479, %v471
        %v560 = vpack.c.b16 %v480, %v472
        %v561 = vpack.c.b16 %v481, %v473
        %v562 = vpack.c.b16 %v482, %v474
        %v563 = vpack.c.b16 %v483, %v475
        %v564 = vpack.c.b16 %v484, %v476
        %v565 = vpack.c.b16 %v485, %v477
        %v566 = vpack.c.b16 %v486, %v478
        %v567 = vpack.c.b16 %v495, %v487
        %v568 = vpack.c.b16 %v496, %v488
        %v569 = vpack.c.b16 %v497, %v489
        %v570 = vpack.c.b16 %v498, %v490
        %v571 = vpack.c.b16 %v499, %v491
        %v572 = vpack.c.b16 %v500, %v492
        %v573 = vpack.c.b16 %v501, %v493
        %v574 = vpack.c.b16 %v502, %v494
        %v575 = vpack.c.b16 %v511, %v503
        %v576 = vpack.c.b16 %v512, %v504
        %v577 = vpack.c.b16 %v513, %v505
        %v578 = vpack.c.b16 %v514, %v506
        %v579 = vpack.c.b16 %v515, %v507
        %v580 = vpack.c.b16 %v516, %v508
        %v581 = vpack.c.b16 %v517, %v509
        %v582 = vpack.c.b16 %v518, %v510
        %v583 = vpack.c.b16 %v527, %v519
        %v584 = vpack.c.b16 %v528, %v520
        %v585 = vpack.c.b16 %v529, %v521
        %v586 = vpack.c.b16 %v530, %v522
        %v587 = vpack.c.b16 %v531, %v523
        %v588 = vpack.c.b16 %v532, %v524
        %v589 = vpack.c.b16 %v533, %v525
        %v590 = vpack.c.b16 %v534, %v526
        %vm639 = vcmask 883712
        %v641 = vsel %vm639, %v304, 0
        %vm643 = vcmask 1045504
        %v645 = vsel %vm643, %v583, 0
        %v648 = vsel %vm643, %v584, 0
        %v651 = vsel %vm643, %v585, 0
        %v654 = vsel %vm643, %v586, 0
        %v657 = vsel %vm643, %v587, 0
        %v660 = vsel %vm643, %v588, 0
        %v663 = vsel %vm643, %v589, 0
        %v666 = vsel %vm643, %v590, 0
        %668 = vmatprep.subr.bf16.mxu0 %v536
        %669 = vmatpush1.bf16.msra.mxu0 %v535
        %670 = vmatprep.subr.bf16.mxu0 %v544
        %671 = vmatpush1.bf16.msra.mxu0 %v543
        %672 = vmatprep.subr.bf16.mxu0 %v552
        %673 = vmatpush1.bf16.msra.mxu0 %v551
        %674 = vmatprep.subr.bf16.mxu0 %v560
        %675 = vmatpush1.bf16.msra.mxu0 %v559
        %676 = vmatprep.subr.bf16.mxu0 %v568
        %677 = vmatpush1.bf16.msra.mxu0 %v567
        %678 = vmatprep.subr.bf16.mxu0 %v576
        %679 = vmatpush1.bf16.msra.mxu0 %v575
        %680 = vmatprep.subr.bf16.mxu0 %v648
        %681 = vmatpush1.bf16.msra.mxu0 %v645
        %682 = vmatprep.subr.bf16.mxu0 0
        %683 = vmatpush1.bf16.msra.mxu0 0
        %684 = vmatprep.subr.bf16.mxu0 0
        %685 = vmatpush1.bf16.msra.mxu0 0
        %686 = vmatprep.subr.bf16.mxu0 0
        %687 = vmatpush1.bf16.msra.mxu0 0
        %688 = vmatprep.subr.bf16.mxu0 0
        %689 = vmatpush1.bf16.msra.mxu0 0
        %690 = vmatprep.subr.bf16.mxu0 0
        %691 = vmatpush1.bf16.msra.mxu0 0
        %692 = vmatprep.subr.bf16.mxu0 0
        %693 = vmatpush1.bf16.msra.mxu0 0
        %694 = vmatprep.subr.bf16.mxu0 0
        %695 = vmatpush1.bf16.msra.mxu0 0
        %696 = vmatprep.subr.bf16.mxu0 0
        %697 = vmatpush1.bf16.msra.mxu0 0
        %698 = vmatprep.subr.bf16.mxu0 0
        %699 = vmatpush1.bf16.msra.mxu0 0
        %700 = vmatprep.mubr.bf16.mxu0 0
        %701 = vmatmul.mubr.bf16.gmra.mrb[0].mxu0 %v641
        %v702 = vpop.f32.mrb[0].mxu0
        %v703 = vadd.f32 %v365, %v702
        %v704 = vpop.f32.mrb[0].mxu0
        %v705 = vadd.f32 %v365, %v704
        %v706 = vpop.f32.mrb[0].mxu0
        %v707 = vpop.f32.mrb[0].mxu0
        %708 = vdwg.mxu0
        %709 = vmatprep.subr.bf16.mxu0 %v538
        %710 = vmatpush1.bf16.msra.mxu0 %v537
        %711 = vmatprep.subr.bf16.mxu0 %v546
        %712 = vmatpush1.bf16.msra.mxu0 %v545
        %713 = vmatprep.subr.bf16.mxu0 %v554
        %714 = vmatpush1.bf16.msra.mxu0 %v553
        %715 = vmatprep.subr.bf16.mxu0 %v562
        %716 = vmatpush1.bf16.msra.mxu0 %v561
        %717 = vmatprep.subr.bf16.mxu0 %v570
        %718 = vmatpush1.bf16.msra.mxu0 %v569
        %719 = vmatprep.subr.bf16.mxu0 %v578
        %720 = vmatpush1.bf16.msra.mxu0 %v577
        %721 = vmatprep.subr.bf16.mxu0 %v654
        %722 = vmatpush1.bf16.msra.mxu0 %v651
        %723 = vmatprep.subr.bf16.mxu0 0
        %724 = vmatpush1.bf16.msra.mxu0 0
        %725 = vmatprep.subr.bf16.mxu0 0
        %726 = vmatpush1.bf16.msra.mxu0 0
        %727 = vmatprep.subr.bf16.mxu0 0
        %728 = vmatpush1.bf16.msra.mxu0 0
        %729 = vmatprep.subr.bf16.mxu0 0
        %730 = vmatpush1.bf16.msra.mxu0 0
        %731 = vmatprep.subr.bf16.mxu0 0
        %732 = vmatpush1.bf16.msra.mxu0 0
        %733 = vmatprep.subr.bf16.mxu0 0
        %734 = vmatpush1.bf16.msra.mxu0 0
        %735 = vmatprep.subr.bf16.mxu0 0
        %736 = vmatpush1.bf16.msra.mxu0 0
        %737 = vmatprep.subr.bf16.mxu0 0
        %738 = vmatpush1.bf16.msra.mxu0 0
        %739 = vmatprep.subr.bf16.mxu0 0
        %740 = vmatpush1.bf16.msra.mxu0 0
        %741 = vmatprep.mubr.bf16.mxu0 0
        %742 = vmatmul.mubr.bf16.gmra.mrb[0].mxu0 %v641
        %v743 = vpop.f32.mrb[0].mxu0
        %v744 = vadd.f32 %v365, %v743
        %v745 = vpop.f32.mrb[0].mxu0
        %v746 = vadd.f32 %v365, %v745
        %v747 = vpop.f32.mrb[0].mxu0
        %v748 = vpop.f32.mrb[0].mxu0
        %749 = vdwg.mxu0
        %750 = vmatprep.subr.bf16.mxu0 %v540
        %751 = vmatpush1.bf16.msra.mxu0 %v539
        %752 = vmatprep.subr.bf16.mxu0 %v548
        %753 = vmatpush1.bf16.msra.mxu0 %v547
        %754 = vmatprep.subr.bf16.mxu0 %v556
        %755 = vmatpush1.bf16.msra.mxu0 %v555
        %756 = vmatprep.subr.bf16.mxu0 %v564
        %757 = vmatpush1.bf16.msra.mxu0 %v563
        %758 = vmatprep.subr.bf16.mxu0 %v572
        %759 = vmatpush1.bf16.msra.mxu0 %v571
        %760 = vmatprep.subr.bf16.mxu0 %v580
        %761 = vmatpush1.bf16.msra.mxu0 %v579
        %762 = vmatprep.subr.bf16.mxu0 %v660
        %763 = vmatpush1.bf16.msra.mxu0 %v657
        %764 = vmatprep.subr.bf16.mxu0 0
        %765 = vmatpush1.bf16.msra.mxu0 0
        %766 = vmatprep.subr.bf16.mxu0 0
        %767 = vmatpush1.bf16.msra.mxu0 0
        %768 = vmatprep.subr.bf16.mxu0 0
        %769 = vmatpush1.bf16.msra.mxu0 0
        %770 = vmatprep.subr.bf16.mxu0 0
        %771 = vmatpush1.bf16.msra.mxu0 0
        %772 = vmatprep.subr.bf16.mxu0 0
        %773 = vmatpush1.bf16.msra.mxu0 0
        %774 = vmatprep.subr.bf16.mxu0 0
        %775 = vmatpush1.bf16.msra.mxu0 0
        %776 = vmatprep.subr.bf16.mxu0 0
        %777 = vmatpush1.bf16.msra.mxu0 0
        %778 = vmatprep.subr.bf16.mxu0 0
        %779 = vmatpush1.bf16.msra.mxu0 0
        %780 = vmatprep.subr.bf16.mxu0 0
        %781 = vmatpush1.bf16.msra.mxu0 0
        %782 = vmatprep.mubr.bf16.mxu0 0
        %783 = vmatmul.mubr.bf16.gmra.mrb[0].mxu0 %v641
        %v784 = vpop.f32.mrb[0].mxu0
        %v785 = vadd.f32 %v365, %v784
        %v786 = vpop.f32.mrb[0].mxu0
        %v787 = vadd.f32 %v365, %v786
        %v788 = vpop.f32.mrb[0].mxu0
        %v789 = vpop.f32.mrb[0].mxu0
        %790 = vdwg.mxu0
        %791 = vmatprep.subr.bf16.mxu0 %v542
        %792 = vmatpush1.bf16.msra.mxu0 %v541
        %793 = vmatprep.subr.bf16.mxu0 %v550
        %794 = vmatpush1.bf16.msra.mxu0 %v549
        %795 = vmatprep.subr.bf16.mxu0 %v558
        %796 = vmatpush1.bf16.msra.mxu0 %v557
        %797 = vmatprep.subr.bf16.mxu0 %v566
        %798 = vmatpush1.bf16.msra.mxu0 %v565
        %799 = vmatprep.subr.bf16.mxu0 %v574
        %800 = vmatpush1.bf16.msra.mxu0 %v573
        %801 = vmatprep.subr.bf16.mxu0 %v582
        %802 = vmatpush1.bf16.msra.mxu0 %v581
        %803 = vmatprep.subr.bf16.mxu0 %v666
        %804 = vmatpush1.bf16.msra.mxu0 %v663
        %805 = vmatprep.subr.bf16.mxu0 0
        %806 = vmatpush1.bf16.msra.mxu0 0
        %807 = vmatprep.subr.bf16.mxu0 0
        %808 = vmatpush1.bf16.msra.mxu0 0
        %809 = vmatprep.subr.bf16.mxu0 0
        %810 = vmatpush1.bf16.msra.mxu0 0
        %811 = vmatprep.subr.bf16.mxu0 0
        %812 = vmatpush1.bf16.msra.mxu0 0
        %813 = vmatprep.subr.bf16.mxu0 0
        %814 = vmatpush1.bf16.msra.mxu0 0
        %815 = vmatprep.subr.bf16.mxu0 0
        %816 = vmatpush1.bf16.msra.mxu0 0
        %817 = vmatprep.subr.bf16.mxu0 0
        %818 = vmatpush1.bf16.msra.mxu0 0
        %819 = vmatprep.subr.bf16.mxu0 0
        %820 = vmatpush1.bf16.msra.mxu0 0
        %821 = vmatprep.subr.bf16.mxu0 0
        %822 = vmatpush1.bf16.msra.mxu0 0
        %823 = vmatprep.mubr.bf16.mxu0 0
        %824 = vmatmul.mubr.bf16.gmra.mrb[0].mxu0 %v641
        %v825 = vpop.f32.mrb[0].mxu0
        %v826 = vadd.f32 %v365, %v825
        %v827 = vpop.f32.mrb[0].mxu0
        %v828 = vadd.f32 %v365, %v827
        %v829 = vpop.f32.mrb[0].mxu0
        %v830 = vpop.f32.mrb[0].mxu0
        %831 = vdwg.mxu0
        %v832 = vsub.f32 0.0, %v703
        %v833 = vsub.f32 0.0, %v705
        %v834 = vsub.f32 0.0, %v744
        %v835 = vsub.f32 0.0, %v746
        %v836 = vsub.f32 0.0, %v785
        %v837 = vsub.f32 0.0, %v787
        %v838 = vsub.f32 0.0, %v826
        %v839 = vsub.f32 0.0, %v828
        %v840 = vmul.f32 %v832, 1.442695
        %v841 = vpow.pop %v840
        %v842 = vmul.f32 %v833, 1.442695
        %v843 = vpow.pop %v842
        %v844 = vmul.f32 %v834, 1.442695
        %v845 = vpow.pop %v844
        %v846 = vmul.f32 %v835, 1.442695
        %v847 = vpow.pop %v846
        %v848 = vmul.f32 %v836, 1.442695
        %v849 = vpow.pop %v848
        %v850 = vmul.f32 %v837, 1.442695
        %v851 = vpow.pop %v850
        %v852 = vmul.f32 %v838, 1.442695
        %v853 = vpow.pop %v852
        %v854 = vmul.f32 %v839, 1.442695
        %v855 = vpow.pop %v854
        %v856 = vadd.f32 %v841, 1.0
        %v857 = vadd.f32 %v843, 1.0
        %v858 = vadd.f32 %v845, 1.0
        %v859 = vadd.f32 %v847, 1.0
        %v860 = vadd.f32 %v849, 1.0
        %v861 = vadd.f32 %v851, 1.0
        %v862 = vadd.f32 %v853, 1.0
        %v863 = vadd.f32 %v855, 1.0
        %v864 = vrcp.pop %v856
        %v865 = vrcp.pop %v857
        %v866 = vrcp.pop %v858
        %v867 = vrcp.pop %v859
        %v868 = vrcp.pop %v860
        %v869 = vrcp.pop %v861
        %v870 = vrcp.pop %v862
        %v871 = vrcp.pop %v863
        %v872 = vmul.f32 %v703, %v864
        %v873 = vmul.f32 %v705, %v865
        %v874 = vmul.f32 %v744, %v866
        %v875 = vmul.f32 %v746, %v867
        %v876 = vmul.f32 %v785, %v868
        %v877 = vmul.f32 %v787, %v869
        %v878 = vmul.f32 %v826, %v870
        %v879 = vmul.f32 %v828, %v871
        %880 = vst [vmem:[%s301] sm:$0xff] %v872
        %881 = vst [vmem:[%s301 + $0x8] sm:$0xff] %v873
        %882 = vst [vmem:[%s301 + $0x10] sm:$0xff] %v874
        %883 = vst [vmem:[%s301 + $0x18] sm:$0xff] %v875
        %884 = vst [vmem:[%s301 + $0x20] sm:$0xff] %v876
        %885 = vst [vmem:[%s301 + $0x28] sm:$0xff] %v877
        %886 = vst [vmem:[%s301 + $0x30] sm:$0xff] %v878
        %887 = vst [vmem:[%s301 + $0x38] sm:$0xff] %v879
        %s888 = smul.u32 8, %s14
        %p889 = scmp.lt.s32.totalorder %s888, 23
        %s890 = scalar_select %p889, %s888, 23
        %s891 = smul.addr %s890, 8
        %s892 = scalar_lea.vmem %s3, %s891
        // Predicated region
        $region56: #{conv3d_pallas.1} parent=50 // pred_check
          %p893 = pneg %p100
        $region57: #{conv3d_pallas.1} parent=50 // pred_check_branch
          %895 = sbr.rel (%p893) target = $region59
        $region58: #{conv3d_pallas.1} parent=50 // pred_region
          %s896 = smul.u32 8, %s14
        $region59: #{conv3d_pallas.1} parent=50 // pred_fallthru
          _
      $region51: #{conv3d_pallas.1} parent=5 // pred_fallthru
        _
      %p897 = scmp.le.s32.totalorder 2, %s9
      // Predicated region
      $region60: #{conv3d_pallas.1} parent=5 // pred_check
        %p898 = pneg %p897
      $region61: #{conv3d_pallas.1} parent=5 // pred_check_branch
        %900 = sbr.rel (%p898) target = $region63
      $region62: #{conv3d_pallas.1} parent=5 // pred_region
        %s901 = ssub.s32 %s9, 2
        // Predicated region
        $region64: #{conv3d_pallas.1} parent=62 // pred_check
          %p902 = pneg %p106
        $region65: #{conv3d_pallas.1} parent=62 // pred_check_branch
          %904 = sbr.rel (%p902) target = $region67
        $region66: #{conv3d_pallas.1} parent=62 // pred_region
          %s905 = smul.u32 8, %s15
          %p906 = scmp.lt.s32.totalorder %s905, 23
          %s907 = scalar_select %p906, %s905, 23
          %s908 = smul.addr %s907, 8
          %s909 = scalar_lea.vmem %s3, %s908
        $region67: #{conv3d_pallas.1} parent=62 // pred_fallthru
          _
      $region63: #{conv3d_pallas.1} parent=5 // pred_fallthru
        _
    $region6: #{conv3d_pallas.1} parent=1 // loop_footer
      %s13 = sadd.s32 1, %s9
    $region7: #{conv3d_pallas.1} parent=1 // loop_footer_branch
      %8 = sbr.rel target = $region3
    $region8: #{conv3d_pallas.1} parent=1 // loop_exit
      _

</llo_original>
